<compile_context>
chip_gen: v5e
topology: v5e:2x2
jax: 0.10.0
libtpu: 0.0.40
codegen_flags: <defaults>
</compile_context>

<pallas_src>
import functools

import jax
import jax.numpy as jnp
from jax.experimental import pallas as pl
from jax.experimental.pallas import tpu as pltpu

LANES = 128
SUBLANES = 8
MAX_BLOCK_ROWS = 1024   # (1024,128) f32 tile = 512 KiB per input per buffer


def _iou_kernel(x_ref, t_ref, inter_ref, total_ref, acc_i_ref, acc_t_ref, *,
                block_rows, blocks_per_split, n_elems, mask_possible):
    s = pl.program_id(0)            # "parallel" split axis (megacore on v7x)
    j = pl.program_id(1)            # "arbitrary" streaming/reduction axis

    @pl.when(j == 0)
    def _():
        acc_i_ref[...] = jnp.zeros_like(acc_i_ref)
        acc_t_ref[...] = jnp.zeros_like(acc_t_ref)

    x = x_ref[...]
    t = t_ref[...]

    if mask_possible:
        logical_block = s * blocks_per_split + j
        chunk = block_rows * LANES
        needs_mask = (logical_block + 1) * chunk > n_elems

        @pl.when(jnp.logical_not(needs_mask))
        def _():
            acc_i_ref[...] += x * t
            acc_t_ref[...] += x + t

        @pl.when(needs_mask)
        def _():
            row_ids = jax.lax.broadcasted_iota(
                jnp.int32, (block_rows, LANES), 0)
            col_ids = jax.lax.broadcasted_iota(
                jnp.int32, (block_rows, LANES), 1)
            idx = (logical_block * block_rows + row_ids) * LANES + col_ids
            keep = idx < n_elems
            xm = jnp.where(keep, x, 0.0)
            tm = jnp.where(keep, t, 0.0)
            acc_i_ref[...] += xm * tm
            acc_t_ref[...] += xm + tm
    else:
        acc_i_ref[...] += x * t
        acc_t_ref[...] += x + t

    @pl.when(j == pl.num_programs(1) - 1)
    def _():
        # Fold rows in groups of 8 (pure vreg adds, no XLU); the tiny final
        # cross-lane sum happens in the wrapper on the (nsplit*8, 128) output.
        inter_ref[...] = jnp.sum(
            acc_i_ref[...].reshape(block_rows // SUBLANES, SUBLANES, LANES),
            axis=0)
        total_ref[...] = jnp.sum(
            acc_t_ref[...].reshape(block_rows // SUBLANES, SUBLANES, LANES),
            axis=0)


def iou_loss(inputs, targets, smooth=1.0):
    """Pallas implementation of IOULOss.forward. Returns a scalar f32."""
    x = jnp.asarray(inputs, jnp.float32).reshape(-1)
    t = jnp.asarray(targets, jnp.float32).reshape(-1)
    n = x.shape[0]

    # Pad (copy) only when the flat length is not already a multiple of 8*128;
    # otherwise the reshape below is a free re-view of the contiguous buffer.
    align = SUBLANES * LANES
    pad = (-n) % align
    if pad:
        x = jnp.pad(x, (0, pad))
        t = jnp.pad(t, (0, pad))
    rows = (n + pad) // LANES
    x2 = x.reshape(rows, LANES)
    t2 = t.reshape(rows, LANES)

    block_rows = min(MAX_BLOCK_ROWS, rows)          # multiple of 8, <= rows
    total_blocks = pl.cdiv(rows, block_rows)
    nsplit = 2 if total_blocks >= 2 else 1          # split across 2 TCs (v7x)
    blocks_per_split = pl.cdiv(total_blocks, nsplit)

    coverage = nsplit * blocks_per_split * block_rows * LANES
    mask_possible = coverage > n                    # compile-time decision

    def in_map(s, j):
        # Clamp so a (possibly duplicated) trailing block never DMAs fully out
        # of bounds; any duplicated work is zeroed by the in-kernel mask.
        return (jnp.minimum(s * blocks_per_split + j, total_blocks - 1), 0)

    kernel = functools.partial(
        _iou_kernel,
        block_rows=block_rows,
        blocks_per_split=blocks_per_split,
        n_elems=n,
        mask_possible=mask_possible)

    inter_out, total_out = pl.pallas_call(
        kernel,
        out_shape=(
            jax.ShapeDtypeStruct((nsplit * SUBLANES, LANES), jnp.float32),
            jax.ShapeDtypeStruct((nsplit * SUBLANES, LANES), jnp.float32),
        ),
        grid_spec=pltpu.PrefetchScalarGridSpec(
            num_scalar_prefetch=0,
            grid=(nsplit, blocks_per_split),
            in_specs=[
                pl.BlockSpec((block_rows, LANES), in_map),
                pl.BlockSpec((block_rows, LANES), in_map),
            ],
            out_specs=[
                pl.BlockSpec((SUBLANES, LANES), lambda s, j: (s, 0)),
                pl.BlockSpec((SUBLANES, LANES), lambda s, j: (s, 0)),
            ],
            scratch_shapes=[
                pltpu.VMEM((block_rows, LANES), jnp.float32),
                pltpu.VMEM((block_rows, LANES), jnp.float32),
            ],
        ),
        compiler_params=pltpu.CompilerParams(
            dimension_semantics=("parallel", "arbitrary")),
    )(x2, t2)

    intersection = jnp.sum(inter_out)
    total = jnp.sum(total_out)
    union = total - intersection
    iou = (intersection + smooth) / (union + smooth)
    return 1.0 - iou


def _iou_loss_ref(inputs, targets, smooth=1.0):
    x = jnp.asarray(inputs, jnp.float32).reshape(-1)
    t = jnp.asarray(targets, jnp.float32).reshape(-1)
    intersection = jnp.sum(x * t)
    total = jnp.sum(x + t)
    union = total - intersection
    return 1.0 - (intersection + smooth) / (union + smooth)


if __name__ == "__main__":
    key = jax.random.PRNGKey(0)
    k1, k2, k3, k4 = jax.random.split(key, 4)

    # NCHW probability map + binary mask, as a segmentation loss expects.
    x = jax.nn.sigmoid(jax.random.normal(k1, (2, 4, 16, 16), jnp.float32))
    t = (jax.random.uniform(k2, (2, 4, 16, 16)) > 0.5).astype(jnp.float32)

    out = jax.block_until_ready(iou_loss(x, t))
    ref = _iou_loss_ref(x, t)
    assert jnp.allclose(out, ref, rtol=1e-5, atol=1e-5), (out, ref)

    # Secondary check: flat length not a multiple of 8*128 -> exercises the
    # pad + in-kernel iota-mask path.
    x2 = jax.nn.sigmoid(jax.random.normal(k3, (3, 5, 7, 11), jnp.float32))
    t2 = (jax.random.uniform(k4, (3, 5, 7, 11)) > 0.5).astype(jnp.float32)
    out2 = jax.block_until_ready(iou_loss(x2, t2))
    ref2 = _iou_loss_ref(x2, t2)
    assert jnp.allclose(out2, ref2, rtol=1e-5, atol=1e-5), (out2, ref2)

    print("KERNEL_OK")
</pallas_src>

<mosaic_0001>
module attributes {stable_mosaic.version = 11 : i64} {
  func.func @_iou_kernel(%arg0: i32, %arg1: i32, %arg2: memref<16x128xf32, #tpu.memory_space<vmem>>, %arg3: memref<16x128xf32, #tpu.memory_space<vmem>>, %arg4: memref<8x128xf32, #tpu.memory_space<vmem>>, %arg5: memref<8x128xf32, #tpu.memory_space<vmem>>, %arg6: memref<16x128xf32, #tpu.memory_space<vmem>>, %arg7: memref<16x128xf32, #tpu.memory_space<vmem>>) attributes {dimension_semantics = [#tpu.dimension_semantics<parallel>, #tpu.dimension_semantics<arbitrary>], iteration_bounds = array<i64: 1, 1>, scalar_prefetch = 0 : i64, scratch_operands = 2 : i64, tpu.core_type = #tpu.core_type<tc>, window_params = [{transform_indices = @transform_0, window_bounds = array<i64: 16, 128>}, {transform_indices = @transform_1, window_bounds = array<i64: 16, 128>}, {transform_indices = @transform_2, window_bounds = array<i64: 8, 128>}, {transform_indices = @transform_3, window_bounds = array<i64: 8, 128>}]} {
    %c0_i32 = arith.constant 0 : i32
    %0 = arith.cmpi eq, %arg1, %c0_i32 : i32
    %1 = arith.extui %0 : i1 to i32
    %c0_i32_0 = arith.constant 0 : i32
    %2 = arith.cmpi ne, %1, %c0_i32_0 : i32
    scf.if %2 {
      %cst = arith.constant 0.000000e+00 : f32
      %16 = vector.broadcast %cst : f32 to vector<16x128xf32>
      %c0_14 = arith.constant 0 : index
      %c0_15 = arith.constant 0 : index
      %17 = vector.load %arg6[%c0_14, %c0_15] : memref<16x128xf32, #tpu.memory_space<vmem>>, vector<16x128xf32>
      tpu.vector_store %arg6[%c0_14, %c0_15], %16 {strides = array<i32>} : memref<16x128xf32, #tpu.memory_space<vmem>>, vector<16x128xf32>,
      %cst_16 = arith.constant 0.000000e+00 : f32
      %18 = vector.broadcast %cst_16 : f32 to vector<16x128xf32>
      %c0_17 = arith.constant 0 : index
      %c0_18 = arith.constant 0 : index
      %19 = vector.load %arg7[%c0_17, %c0_18] : memref<16x128xf32, #tpu.memory_space<vmem>>, vector<16x128xf32>
      tpu.vector_store %arg7[%c0_17, %c0_18], %18 {strides = array<i32>} : memref<16x128xf32, #tpu.memory_space<vmem>>, vector<16x128xf32>,
    } else {
    }
    %c0 = arith.constant 0 : index
    %c0_1 = arith.constant 0 : index
    %3 = vector.load %arg2[%c0, %c0_1] : memref<16x128xf32, #tpu.memory_space<vmem>>, vector<16x128xf32>
    %c0_2 = arith.constant 0 : index
    %c0_3 = arith.constant 0 : index
    %4 = vector.load %arg3[%c0_2, %c0_3] : memref<16x128xf32, #tpu.memory_space<vmem>>, vector<16x128xf32>
    %c0_4 = arith.constant 0 : index
    %c0_5 = arith.constant 0 : index
    %5 = vector.load %arg6[%c0_4, %c0_5] : memref<16x128xf32, #tpu.memory_space<vmem>>, vector<16x128xf32>
    %6 = arith.mulf %3, %4 : vector<16x128xf32>
    %7 = arith.addf %5, %6 : vector<16x128xf32>
    %c0_6 = arith.constant 0 : index
    %c0_7 = arith.constant 0 : index
    %8 = vector.load %arg6[%c0_6, %c0_7] : memref<16x128xf32, #tpu.memory_space<vmem>>, vector<16x128xf32>
    tpu.vector_store %arg6[%c0_6, %c0_7], %7 {strides = array<i32>} : memref<16x128xf32, #tpu.memory_space<vmem>>, vector<16x128xf32>,
    %c0_8 = arith.constant 0 : index
    %c0_9 = arith.constant 0 : index
    %9 = vector.load %arg7[%c0_8, %c0_9] : memref<16x128xf32, #tpu.memory_space<vmem>>, vector<16x128xf32>
    %10 = arith.addf %3, %4 : vector<16x128xf32>
    %11 = arith.addf %9, %10 : vector<16x128xf32>
    %c0_10 = arith.constant 0 : index
    %c0_11 = arith.constant 0 : index
    %12 = vector.load %arg7[%c0_10, %c0_11] : memref<16x128xf32, #tpu.memory_space<vmem>>, vector<16x128xf32>
    tpu.vector_store %arg7[%c0_10, %c0_11], %11 {strides = array<i32>} : memref<16x128xf32, #tpu.memory_space<vmem>>, vector<16x128xf32>,
    %c0_i32_12 = arith.constant 0 : i32
    %13 = arith.cmpi eq, %arg1, %c0_i32_12 : i32
    %14 = arith.extui %13 : i1 to i32
    %c0_i32_13 = arith.constant 0 : i32
    %15 = arith.cmpi ne, %14, %c0_i32_13 : i32
    scf.if %15 {
      %c0_14 = arith.constant 0 : index
      %c0_15 = arith.constant 0 : index
      %16 = vector.load %arg6[%c0_14, %c0_15] : memref<16x128xf32, #tpu.memory_space<vmem>>, vector<16x128xf32>
      %17 = vector.shape_cast %16 : vector<16x128xf32> to vector<2x8x128xf32>
      %cst = arith.constant dense<0.000000e+00> : vector<8x128xf32>
      %18 = vector.multi_reduction <add>, %17, %cst [0] : vector<2x8x128xf32> to vector<8x128xf32>
      %c0_16 = arith.constant 0 : index
      %c0_17 = arith.constant 0 : index
      %19 = vector.load %arg4[%c0_16, %c0_17] : memref<8x128xf32, #tpu.memory_space<vmem>>, vector<8x128xf32>
      tpu.vector_store %arg4[%c0_16, %c0_17], %18 {strides = array<i32>} : memref<8x128xf32, #tpu.memory_space<vmem>>, vector<8x128xf32>,
      %c0_18 = arith.constant 0 : index
      %c0_19 = arith.constant 0 : index
      %20 = vector.load %arg7[%c0_18, %c0_19] : memref<16x128xf32, #tpu.memory_space<vmem>>, vector<16x128xf32>
      %21 = vector.shape_cast %20 : vector<16x128xf32> to vector<2x8x128xf32>
      %cst_20 = arith.constant dense<0.000000e+00> : vector<8x128xf32>
      %22 = vector.multi_reduction <add>, %21, %cst_20 [0] : vector<2x8x128xf32> to vector<8x128xf32>
      %c0_21 = arith.constant 0 : index
      %c0_22 = arith.constant 0 : index
      %23 = vector.load %arg5[%c0_21, %c0_22] : memref<8x128xf32, #tpu.memory_space<vmem>>, vector<8x128xf32>
      tpu.vector_store %arg5[%c0_21, %c0_22], %22 {strides = array<i32>} : memref<8x128xf32, #tpu.memory_space<vmem>>, vector<8x128xf32>,
    } else {
    }
    return
  }
  func.func @transform_0(%arg0: i32, %arg1: i32) -> (i32, i32) {
    %c1_i32 = arith.constant 1 : i32
    %0 = arith.muli %arg0, %c1_i32 : i32
    %1 = arith.addi %0, %arg1 : i32
    %c0_i32 = arith.constant 0 : i32
    %2 = arith.minsi %1, %c0_i32 : i32
    %c0_i32_0 = arith.constant 0 : i32
    %c0_i32_1 = arith.constant 0 : i32
    return %2, %c0_i32_0 : i32, i32
  }
  func.func @transform_1(%arg0: i32, %arg1: i32) -> (i32, i32) {
    %c1_i32 = arith.constant 1 : i32
    %0 = arith.muli %arg0, %c1_i32 : i32
    %1 = arith.addi %0, %arg1 : i32
    %c0_i32 = arith.constant 0 : i32
    %2 = arith.minsi %1, %c0_i32 : i32
    %c0_i32_0 = arith.constant 0 : i32
    %c0_i32_1 = arith.constant 0 : i32
    return %2, %c0_i32_0 : i32, i32
  }
  func.func @transform_2(%arg0: i32, %arg1: i32) -> (i32, i32) {
    %c0_i32 = arith.constant 0 : i32
    %c0_i32_0 = arith.constant 0 : i32
    return %arg0, %c0_i32 : i32, i32
  }
  func.func @transform_3(%arg0: i32, %arg1: i32) -> (i32, i32) {
    %c0_i32 = arith.constant 0 : i32
    %c0_i32_0 = arith.constant 0 : i32
    return %arg0, %c0_i32 : i32, i32
  }
}

</mosaic_0001>

<llo_original>
// kernel: tpu_custom_call.1
$region0: #{tpu_custom_call.1}
  #allocation0 [shape = 'u32[]', space=smem, size = 0x4, offset = 0x4, fixed_abs, tag = 'smem constant byte address 0x4 - core index']
  #allocation1 [shape = 'u32[72,128]{1,0:T(1,128)}', space=vmem, size = 0x9000, scoped, tag = 'internal scratch']
  #allocation2 [shape = 'f32[16,128]{1,0:T(8,128)}', space=vmem, size = 0x2000, scoped, tag = 'scratch operand']
  #allocation3 [shape = 'f32[16,128]{1,0:T(8,128)}', space=vmem, size = 0x2000, scoped, tag = 'scratch operand']
  %s0 = inlined_call_operand.hbm [shape: f32[16,128], index: 0, kind: input, shape index: {}]
  %s1 = inlined_call_operand.hbm [shape: f32[16,128], index: 1, kind: input, shape index: {}]
  %s2 = inlined_call_operand.hbm [shape: f32[8,128], index: 2, kind: output, shape index: {0}]
  %s3 = inlined_call_operand.hbm [shape: f32[8,128], index: 3, kind: output, shape index: {1}]
  %4 = xla_tuple %s2, %s3
  %s5 = sld [smem:[#allocation0]]
  $region42: #{tpu_custom_call.1} parent=0
    _
  %s7 = ssub.s32 1, %s5
  %s8 = scalar_select 0, %s7, %s5
  $region1: #{tpu_custom_call.1} parent=0
    #allocation4 [shape = 'u8[8192]{0}', space=vmem, size = 0x2000, scoped, tag = 'input window, operand 0, single buffered']
    #allocation5 [shape = 's32[1]{0}', space=sflag, size = 0x4, scoped, tag = 'scoped memory for tpu_custom_call.1']
    #allocation6 [shape = 's32[1]{0}', space=sflag, size = 0x4, scoped, tag = 'scoped memory for tpu_custom_call.1']
    #allocation7 [shape = 'u8[8192]{0}', space=vmem, size = 0x2000, scoped, tag = 'input window, operand 1, single buffered']
    #allocation8 [shape = 's32[1]{0}', space=sflag, size = 0x4, scoped, tag = 'scoped memory for tpu_custom_call.1']
    #allocation9 [shape = 'u8[4096]{0}', space=vmem, size = 0x1000, scoped, tag = 'output window, operand 0, single buffered']
    #allocation10 [shape = 'u8[4096]{0}', space=vmem, size = 0x1000, scoped, tag = 'output window, operand 1, single buffered']
    #allocation11 [shape = 's32[1]{0}', space=sflag, size = 0x4, scoped, tag = 'scoped memory for tpu_custom_call.1']
    %9 = vsyncpa [#allocation5], 0
    %10 = vsyncpa [#allocation8], 0
    %11 = vsyncpa [#allocation6], 0
    %12 = vsyncpa [#allocation11], 0
    // Predicated region
    $region2: #{tpu_custom_call.1} parent=1 // pred_check
      _
    $region3: #{tpu_custom_call.1} parent=1 // pred_check_branch
      %14 = sbr.rel (0) target = $region5
    $region4: #{tpu_custom_call.1} parent=1 // pred_region
      %s15 = sadd.s32 0, 0
      %p16 = scmp.lt.s32.totalorder %s15, 0
      %s17 = scalar_select %p16, %s15, 0
      %s18 = smul.u32 2, %s17
      %20 = vsyncadd [#allocation5], 0
      %s21 = smul.addr %s18, 8
      %s22 = scalar_lea.hbm %s0, %s21
      %s23 = sshll.u32 %s22, 4
      %s24 = int_to_ptr.hbm [resolvable:$true] %s23
      %s25 = sshll.u32 [#allocation4], 4
      %s26 = int_to_ptr.vmem [resolvable:$true] %s25
      %31 = dma.hbm_to_vmem [thread:$0]  %s24, 256, %s26, [#allocation5], 128, 128, 8
    $region5: #{tpu_custom_call.1} parent=1 // pred_fallthru
      _
    // Predicated region
    $region6: #{tpu_custom_call.1} parent=1 // pred_check
      _
    $region7: #{tpu_custom_call.1} parent=1 // pred_check_branch
      %33 = sbr.rel (0) target = $region9
    $region8: #{tpu_custom_call.1} parent=1 // pred_region
      %s34 = sadd.s32 0, 0
      %p35 = scmp.lt.s32.totalorder %s34, 0
      %s36 = scalar_select %p35, %s34, 0
      %s37 = smul.u32 2, %s36
      %39 = vsyncadd [#allocation8], 0
      %s40 = smul.addr %s37, 8
      %s41 = scalar_lea.hbm %s1, %s40
      %s42 = sshll.u32 %s41, 4
      %s43 = int_to_ptr.hbm [resolvable:$true] %s42
      %s44 = sshll.u32 [#allocation7], 4
      %s45 = int_to_ptr.vmem [resolvable:$true] %s44
      %50 = dma.hbm_to_vmem [thread:$0]  %s43, 256, %s45, [#allocation8], 128, 128, 8
    $region9: #{tpu_custom_call.1} parent=1 // pred_fallthru
      _
    // Predicated region
    $region10: #{tpu_custom_call.1} parent=1 // pred_check
      _
    $region11: #{tpu_custom_call.1} parent=1 // pred_check_branch
      %52 = sbr.rel (0) target = $region13
    $region12: #{tpu_custom_call.1} parent=1 // pred_region
      %54 = dma.done [#allocation5], 256
    $region13: #{tpu_custom_call.1} parent=1 // pred_fallthru
      _
    // Predicated region
    $region14: #{tpu_custom_call.1} parent=1 // pred_check
      _
    $region15: #{tpu_custom_call.1} parent=1 // pred_check_branch
      %56 = sbr.rel (0) target = $region17
    $region16: #{tpu_custom_call.1} parent=1 // pred_region
      %58 = dma.done [#allocation8], 256
    $region17: #{tpu_custom_call.1} parent=1 // pred_fallthru
      _
    %s59 = sadd.s32 0, 0
    %p60 = scmp.lt.s32.totalorder %s59, 0
    %s61 = scalar_select %p60, %s59, 0
    %s62 = smul.u32 2, %s61
    %s63 = sadd.s32 0, 0
    %p64 = scmp.lt.s32.totalorder %s63, 0
    %s65 = scalar_select %p64, %s63, 0
    %s66 = smul.u32 2, %s65
    %p67 = scmp.eq.s32.totalorder 0, 0
    // Predicated region
    $region18: #{tpu_custom_call.1} parent=1 // pred_check
      %p68 = pneg %p67
    $region19: #{tpu_custom_call.1} parent=1 // pred_check_branch
      %70 = sbr.rel (%p68) target = $region21
    $region20: #{tpu_custom_call.1} parent=1 // pred_region
      %71 = vst [vmem:[#allocation2] sm:$0xff] 0.0
      %72 = vst [vmem:[#allocation2 + $0x8] sm:$0xff] 0.0
      %73 = vst [vmem:[#allocation3] sm:$0xff] 0.0
      %74 = vst [vmem:[#allocation3 + $0x8] sm:$0xff] 0.0
    $region21: #{tpu_custom_call.1} parent=1 // pred_fallthru
      _
    %v75 = vld [vmem:[#allocation4] sm:$0xff]
    %v76 = vld [vmem:[#allocation4 + $0x8] sm:$0xff]
    %v77 = vld [vmem:[#allocation7] sm:$0xff]
    %v78 = vld [vmem:[#allocation7 + $0x8] sm:$0xff]
    %v79 = vld [vmem:[#allocation2] sm:$0xff]
    %v80 = vld [vmem:[#allocation2 + $0x8] sm:$0xff]
    %v81 = vmul.f32 %v75, %v77
    %v82 = vmul.f32 %v76, %v78
    %v83 = vadd.f32 %v79, %v81
    %v84 = vadd.f32 %v80, %v82
    %85 = vst [vmem:[#allocation2] sm:$0xff] %v83
    %86 = vst [vmem:[#allocation2 + $0x8] sm:$0xff] %v84
    %v87 = vld [vmem:[#allocation3] sm:$0xff]
    %v88 = vld [vmem:[#allocation3 + $0x8] sm:$0xff]
    %v89 = vadd.f32 %v75, %v77
    %v90 = vadd.f32 %v76, %v78
    %v91 = vadd.f32 %v87, %v89
    %v92 = vadd.f32 %v88, %v90
    %93 = vst [vmem:[#allocation3] sm:$0xff] %v91
    %94 = vst [vmem:[#allocation3 + $0x8] sm:$0xff] %v92
    // Predicated region
    $region22: #{tpu_custom_call.1} parent=1 // pred_check
      %p95 = pneg %p67
    $region23: #{tpu_custom_call.1} parent=1 // pred_check_branch
      %97 = sbr.rel (%p95) target = $region25
    $region24: #{tpu_custom_call.1} parent=1 // pred_region
      %v98 = vld [vmem:[#allocation2] sm:$0xff]
      %v99 = vld [vmem:[#allocation2 + $0x8] sm:$0xff]
      %v100 = vadd.f32 %v98, %v99
      %101 = vst [vmem:[#allocation9] sm:$0xff] %v100
      %v102 = vld [vmem:[#allocation3] sm:$0xff]
      %v103 = vld [vmem:[#allocation3 + $0x8] sm:$0xff]
      %v104 = vadd.f32 %v102, %v103
      %105 = vst [vmem:[#allocation10] sm:$0xff] %v104
    $region25: #{tpu_custom_call.1} parent=1 // pred_fallthru
      _
    // Predicated region
    $region26: #{tpu_custom_call.1} parent=1 // pred_check
      _
    $region27: #{tpu_custom_call.1} parent=1 // pred_check_branch
      %107 = sbr.rel (0) target = $region29
    $region28: #{tpu_custom_call.1} parent=1 // pred_region
      %109 = vsyncadd [#allocation6], 0
      %s111 = sshll.u32 [#allocation9], 4
      %s112 = int_to_ptr.vmem [resolvable:$true] %s111
      %s113 = sshll.u32 %s2, 4
      %s114 = int_to_ptr.hbm [resolvable:$true] %s113
      %116 = dma.vmem_to_hbm [thread:$0]  %s112, 128, %s114, [#allocation6]
    $region29: #{tpu_custom_call.1} parent=1 // pred_fallthru
      _
    // Predicated region
    $region30: #{tpu_custom_call.1} parent=1 // pred_check
      _
    $region31: #{tpu_custom_call.1} parent=1 // pred_check_branch
      %118 = sbr.rel (0) target = $region33
    $region32: #{tpu_custom_call.1} parent=1 // pred_region
      %120 = vsyncadd [#allocation11], 0
      %s122 = sshll.u32 [#allocation10], 4
      %s123 = int_to_ptr.vmem [resolvable:$true] %s122
      %s124 = sshll.u32 %s3, 4
      %s125 = int_to_ptr.hbm [resolvable:$true] %s124
      %127 = dma.vmem_to_hbm [thread:$0]  %s123, 128, %s125, [#allocation11]
    $region33: #{tpu_custom_call.1} parent=1 // pred_fallthru
      _
    // Predicated region
    $region34: #{tpu_custom_call.1} parent=1 // pred_check
      _
    $region35: #{tpu_custom_call.1} parent=1 // pred_check_branch
      %129 = sbr.rel (0) target = $region37
    $region36: #{tpu_custom_call.1} parent=1 // pred_region
      %131 = dma.done [#allocation6], 128
    $region37: #{tpu_custom_call.1} parent=1 // pred_fallthru
      _
    // Predicated region
    $region38: #{tpu_custom_call.1} parent=1 // pred_check
      _
    $region39: #{tpu_custom_call.1} parent=1 // pred_check_branch
      %133 = sbr.rel (0) target = $region41
    $region40: #{tpu_custom_call.1} parent=1 // pred_region
      %135 = dma.done [#allocation11], 128
    $region41: #{tpu_custom_call.1} parent=1 // pred_fallthru
      _
    %136 = vsyncpa [#allocation5], 1
    %137 = vsyncpa [#allocation8], 1
    %138 = vsyncpa [#allocation6], 1
    %139 = vsyncpa [#allocation11], 1

</llo_original>
